<compile_context>
chip_gen: v5e
topology: v5e:2x2
jax: 0.10.0
libtpu: 0.0.40
codegen_flags: <defaults>
</compile_context>

<pallas_src>
import functools

import jax
import jax.numpy as jnp
from jax.experimental import pallas as pl
from jax.experimental.pallas import tpu as pltpu

LANE = 128


def _round_up(x, m):
    return (x + m - 1) // m * m


def _cdiv(a, b):
    return -(-a // b)


# ----------------------------------------------------------------------------
# Fused kernel: model projection + masked-L1 loss partial sums.
# One grid step handles (batch b, time-split s, time-tile j).
# ----------------------------------------------------------------------------
def _fused_model_loss_kernel(lens_ref,                                   # scalar prefetch (SMEM)
                             x_ref, wx_ref, bias_ref, invs_ref, y_ref,   # inputs (VMEM tiles)
                             pred_ref, lpart_ref,                        # outputs
                             *, tiles_per_split, n_mels):
    b = pl.program_id(0)
    s = pl.program_id(1)
    j = pl.program_id(2)
    tm = x_ref.shape[0]

    # ---- model: single MXU matmul; x tile cast to bf16 in-register (x stays f32 in HBM) ----
    x_bf = x_ref[...].astype(jnp.bfloat16)
    pred = jnp.dot(x_bf, wx_ref[...], preferred_element_type=jnp.float32)
    pred = pred + bias_ref[...]                    # (1, MP) f32 broadcast: spk emb folded in
    pred_ref[...] = pred.astype(pred_ref.dtype)    # bf16, lane-dense (TM, MP) store

    # ---- fused masked-L1 partial sum (numerator only; count done in wrapper) ----
    t = s * tiles_per_split + j                    # unclamped linear time-tile index
    n_valid = lens_ref[b]                          # min(x_len[b], truncated T)
    row = jax.lax.broadcasted_iota(jnp.int32, (tm, 1), 0) + t * tm
    mask = row < n_valid                           # (TM, 1) bool
    diff = jnp.abs(pred[:, :n_mels] - y_ref[...]) * invs_ref[...]
    # jnp.where (not multiply) so NaN/Inf from unspecified rows of overhanging
    # partial blocks cannot leak into the sum.
    diff = jnp.where(mask, diff, 0.0)
    part = jnp.sum(diff, axis=0, keepdims=True)    # (1, M) per-lane partial

    @pl.when(j == 0)
    def _():
        lpart_ref[...] = jnp.zeros_like(lpart_ref)
    lpart_ref[...] += part


# ----------------------------------------------------------------------------
# DownstreamExpert.forward equivalent (train split: compute loss + predictions)
# ----------------------------------------------------------------------------
def downstream_expert_forward(params, stats_mean, stats_scale,
                              input_features_padded, input_feature_lengths,
                              ref_spk_embs, acoustic_features_padded,
                              acoustic_feature_lengths,
                              *, row_tile=1024, time_splits=None):
    # mean cancels exactly: (x-mean)/s - (y-mean)/s == (x-y)/s
    del stats_mean
    # torch Loss.forward always ends up masking with x_lens after truncation
    # (second `if` branch always fires) -> acoustic_feature_lengths unused.
    del acoustic_feature_lengths

    x = input_features_padded              # (B, T, D_up)  -- NOT copied/cast in the wrapper
    y = acoustic_features_padded           # (B, Ty, M)    -- NOT copied/padded in the wrapper
    B, T, D_up = x.shape
    Ty = y.shape[1]
    M = params["wx"].shape[-1]
    MP = _round_up(M, LANE)                # lane-dense prediction channels

    # Balanced time tiles (multiple of 16 for bf16 sublane packing of the pred store).
    n_tiles0 = max(1, _cdiv(T, row_tile))
    TM = _round_up(_cdiv(T, n_tiles0), 16)
    n_tiles = _cdiv(T, TM)

    # v7x: feed both TensorCores when the batch axis alone cannot.
    if time_splits is None:
        time_splits = 2 if B == 1 else 1
    SPLITS = max(1, min(time_splits, n_tiles))
    TPS = _cdiv(n_tiles, SPLITS)           # time tiles per split

    # ---- tiny wrapper-side prep (resident operands only; negligible bytes) ----
    wx_p = jnp.pad(params["wx"], ((0, 0), (0, MP - M))).astype(jnp.bfloat16)  # (D_up, MP)
    spk_bias = (ref_spk_embs.astype(jnp.float32) @ params["ws"].astype(jnp.float32)
                + params["b"].astype(jnp.float32))                            # (B, M)
    bias_p = jnp.pad(spk_bias, ((0, 0), (0, MP - M))).reshape(B, 1, MP)       # (B, 1, MP)
    inv_scale = (1.0 / stats_scale).astype(jnp.float32).reshape(1, M)         # (1, M)

    T_trunc = min(T, Ty)
    lens_eff = jnp.minimum(input_feature_lengths.astype(jnp.int32), jnp.int32(T_trunc))
    count = (jnp.sum(lens_eff) * M).astype(jnp.float32)

    last_x_blk = n_tiles - 1
    last_y_blk = max((Ty - 1) // TM, 0)

    def t_lin(s, j):
        return s * TPS + j

    # Clamped index maps: overflow tiles (from the balanced split) and y's
    # different time extent re-read the last in-bounds block; those rows are
    # always masked out of the loss and (for pred) written out-of-bounds,
    # which Pallas discards.
    x_map     = lambda b, s, j, lens: (b, jnp.minimum(t_lin(s, j), last_x_blk), 0)
    wx_map    = lambda b, s, j, lens: (0, 0)
    bias_map  = lambda b, s, j, lens: (b, 0, 0)
    invs_map  = lambda b, s, j, lens: (0, 0)
    y_map     = lambda b, s, j, lens: (b, jnp.minimum(t_lin(s, j), last_y_blk), 0)
    pred_map  = lambda b, s, j, lens: (b, jnp.minimum(t_lin(s, j), last_x_blk), 0)
    lpart_map = lambda b, s, j, lens: (b, s, 0, 0)

    flops = 2 * B * SPLITS * TPS * TM * D_up * MP
    bytes_accessed = (x.size * x.dtype.itemsize
                      + y.size * y.dtype.itemsize
                      + B * T * MP * 2                       # bf16 pred writeback
                      + wx_p.size * 2 + bias_p.size * 4 + inv_scale.size * 4)

    kernel = functools.partial(_fused_model_loss_kernel,
                               tiles_per_split=TPS, n_mels=M)

    pred_padded, lpart = pl.pallas_call(
        kernel,
        out_shape=(jax.ShapeDtypeStruct((B, T, MP), jnp.bfloat16),     # bf16 store (f32 math)
                   jax.ShapeDtypeStruct((B, SPLITS, 1, M), jnp.float32)),
        grid_spec=pltpu.PrefetchScalarGridSpec(
            num_scalar_prefetch=1,
            grid=(B, SPLITS, TPS),
            in_specs=[
                pl.BlockSpec((None, TM, D_up), x_map),     # x tile, source dtype
                pl.BlockSpec((D_up, MP),       wx_map),    # weights (resident)
                pl.BlockSpec((None, 1, MP),    bias_map),  # per-batch bias (spk emb folded)
                pl.BlockSpec((1, M),           invs_map),  # inv_scale (resident, native M)
                pl.BlockSpec((None, TM, M),    y_map),     # target tile, native dtype & M
            ],
            out_specs=[
                pl.BlockSpec((None, TM, MP),      pred_map),   # prediction (bf16, lane-dense)
                pl.BlockSpec((None, None, 1, M),  lpart_map),  # loss partials per (b, split)
            ],
        ),
        compiler_params=pltpu.CompilerParams(
            dimension_semantics=("parallel", "parallel", "arbitrary"),
            vmem_limit_bytes=32 * 1024 * 1024),   # safe on v5e/v6e and v7x (64 MiB phys)
        cost_estimate=pl.CostEstimate(flops=flops, transcendentals=0,
                                      bytes_accessed=int(bytes_accessed)),
    )(lens_eff, x, wx_p, bias_p, inv_scale, y)

    loss = jnp.sum(lpart) / count
    predicted_feature_lengths = input_feature_lengths   # resample_ratio == 1.0 stand-in
    # NOTE: prediction is returned lane-padded (MP channels) and in bf16; the
    # consumer uses `predicted_feature_lengths` / the first M channels.
    return loss, pred_padded, predicted_feature_lengths


# ----------------------------------------------------------------------------
# Pure-JAX reference (original Loss.forward math, for a correctness check)
# ----------------------------------------------------------------------------
def _reference(params, stats_mean, stats_scale, x, x_lens, spk, y, y_lens):
    # mirror the kernel's matmul operand dtype so the comparison is apples-to-apples
    pred = jnp.einsum("btd,dm->btm",
                      x.astype(jnp.bfloat16), params["wx"].astype(jnp.bfloat16),
                      preferred_element_type=jnp.float32)
    pred = pred + (spk @ params["ws"])[:, None, :] + params["b"][None]
    Tx, Ty = pred.shape[1], y.shape[1]
    if Tx > Ty:
        pred_t, y_t = pred[:, :Ty], y
    else:
        pred_t, y_t = pred, y[:, :Tx]
    Tt = pred_t.shape[1]
    mask = (jnp.arange(Tt)[None, :] < x_lens[:, None]).astype(jnp.float32)[..., None]
    xn = (pred_t - stats_mean) / stats_scale
    yn = (y_t - stats_mean) / stats_scale
    total = jnp.sum(jnp.abs(xn - yn) * mask)
    count = jnp.sum(mask) * pred_t.shape[-1]
    return total / count, pred


if __name__ == "__main__":
    key = jax.random.PRNGKey(0)
    B, T_IN, D_UP, D_SPK, N_MELS, T_AC = 2, 40, 64, 16, 16, 44
    keys = jax.random.split(key, 8)

    # pad_sequence-equivalent padded upstream features (padding frames zeroed)
    input_feature_lengths = jnp.array([40, 29], dtype=jnp.int32)
    input_features = jax.random.normal(keys[0], (B, T_IN, D_UP), jnp.float32)
    pad_mask = (jnp.arange(T_IN)[None, :] < input_feature_lengths[:, None])[..., None]
    input_features = input_features * pad_mask.astype(jnp.float32)

    ref_spk_embs = jax.random.normal(keys[1], (B, D_SPK), jnp.float32)
    acoustic_features_padded = jax.random.normal(keys[2], (B, T_AC, N_MELS), jnp.float32)
    acoustic_feature_lengths = jnp.array([44, 33], dtype=jnp.int32)

    # deterministic synthetic model parameters + scaler stats
    params = {
        "wx": 0.1 * jax.random.normal(keys[3], (D_UP, N_MELS), jnp.float32),
        "ws": 0.1 * jax.random.normal(keys[4], (D_SPK, N_MELS), jnp.float32),
        "b": 0.01 * jax.random.normal(keys[5], (1, N_MELS), jnp.float32),
    }
    stats_mean = jax.random.normal(keys[6], (1, N_MELS), jnp.float32)
    stats_scale = 0.5 + jax.nn.softplus(jax.random.normal(keys[7], (1, N_MELS), jnp.float32))

    # small row_tile / explicit time_splits to exercise multi-tile, overhanging
    # partial blocks, y time-clamping and the dual-split (v7x) path at tiny shapes.
    loss, pred_padded, pred_lens = downstream_expert_forward(
        params, stats_mean, stats_scale,
        input_features, input_feature_lengths,
        ref_spk_embs, acoustic_features_padded, acoustic_feature_lengths,
        row_tile=16, time_splits=2)
    jax.block_until_ready((loss, pred_padded))

    ref_loss, ref_pred = _reference(params, stats_mean, stats_scale,
                                    input_features, input_feature_lengths,
                                    ref_spk_embs, acoustic_features_padded,
                                    acoustic_feature_lengths)

    # consumer-side view: first N_MELS channels of the padded bf16 prediction
    pred = pred_padded[:, :, :N_MELS].astype(jnp.float32)
    assert pred_padded.dtype == jnp.bfloat16
    assert bool(jnp.all(pred_lens == input_feature_lengths))
    assert jnp.allclose(pred, ref_pred, rtol=3e-2, atol=3e-2), "pred mismatch"
    assert jnp.allclose(loss, ref_loss, rtol=3e-3, atol=3e-3), (loss, ref_loss)

    print("KERNEL_OK")
</pallas_src>

<mosaic_0001>
module attributes {stable_mosaic.version = 11 : i64} {
  func.func @_fused_model_loss_kernel(%arg0: i32, %arg1: i32, %arg2: i32, %arg3: memref<2xi32, #tpu.memory_space<smem>>, %arg4: memref<1x16x64xf32, #tpu.memory_space<vmem>>, %arg5: memref<64x128xbf16, #tpu.memory_space<vmem>>, %arg6: memref<1x1x128xf32, #tpu.memory_space<vmem>>, %arg7: memref<1x16xf32, #tpu.memory_space<vmem>>, %arg8: memref<1x16x16xf32, #tpu.memory_space<vmem>>, %arg9: memref<1x16x128xbf16, #tpu.memory_space<vmem>>, %arg10: memref<1x1x1x16xf32, #tpu.memory_space<vmem>>) attributes {dimension_semantics = [#tpu.dimension_semantics<parallel>, #tpu.dimension_semantics<parallel>, #tpu.dimension_semantics<arbitrary>], iteration_bounds = array<i64: 2, 2, 2>, scalar_prefetch = 1 : i64, scratch_operands = 0 : i64, tpu.core_type = #tpu.core_type<tc>, window_params = [{transform_indices = @transform_0, window_bounds = array<i64: 1, 16, 64>}, {pipeline_mode = #tpu.pipeline_mode<synchronous>, transform_indices = @transform_1, window_bounds = array<i64: 64, 128>}, {transform_indices = @transform_2, window_bounds = array<i64: 1, 1, 128>}, {pipeline_mode = #tpu.pipeline_mode<synchronous>, transform_indices = @transform_3, window_bounds = array<i64: 1, 16>}, {transform_indices = @transform_4, window_bounds = array<i64: 1, 16, 16>}, {transform_indices = @transform_5, window_bounds = array<i64: 1, 16, 128>}, {transform_indices = @transform_6, window_bounds = array<i64: 1, 1, 1, 16>}]} {
    %c0 = arith.constant 0 : index
    %c0_0 = arith.constant 0 : index
    %c0_1 = arith.constant 0 : index
    %0 = vector.load %arg4[%c0, %c0_0, %c0_1] : memref<1x16x64xf32, #tpu.memory_space<vmem>>, vector<1x16x64xf32>
    %1 = vector.shape_cast %0 : vector<1x16x64xf32> to vector<16x64xf32>
    %2 = arith.truncf %1 : vector<16x64xf32> to vector<16x64xbf16>
    %c0_2 = arith.constant 0 : index
    %c0_3 = arith.constant 0 : index
    %3 = vector.load %arg5[%c0_2, %c0_3] : memref<64x128xbf16, #tpu.memory_space<vmem>>, vector<64x128xbf16>
    %cst = arith.constant dense<0.000000e+00> : vector<16x128xf32>
    %4 = tpu.matmul %2, %3, %cst {dimension_numbers = #tpu.dot_dimension_numbers<[1], [0], [0], [1], [0, 0, 1, 1], [], []>} : vector<16x64xbf16>, vector<64x128xbf16>, vector<16x128xf32> -> vector<16x128xf32>
    %c0_4 = arith.constant 0 : index
    %c0_5 = arith.constant 0 : index
    %c0_6 = arith.constant 0 : index
    %5 = vector.load %arg6[%c0_4, %c0_5, %c0_6] : memref<1x1x128xf32, #tpu.memory_space<vmem>>, vector<1x1x128xf32>
    %6 = vector.shape_cast %5 : vector<1x1x128xf32> to vector<1x128xf32>
    %7 = vector.broadcast %6 : vector<1x128xf32> to vector<16x128xf32>
    %8 = arith.addf %4, %7 : vector<16x128xf32>
    %9 = arith.truncf %8 : vector<16x128xf32> to vector<16x128xbf16>
    %c0_7 = arith.constant 0 : index
    %c0_8 = arith.constant 0 : index
    %c0_9 = arith.constant 0 : index
    %10 = vector.load %arg9[%c0_7, %c0_8, %c0_9] : memref<1x16x128xbf16, #tpu.memory_space<vmem>>, vector<1x16x128xbf16>
    %11 = vector.shape_cast %10 : vector<1x16x128xbf16> to vector<16x128xbf16>
    %12 = vector.shape_cast %9 : vector<16x128xbf16> to vector<1x16x128xbf16>
    tpu.vector_store %arg9[%c0_7, %c0_8, %c0_9], %12 {strides = array<i32>} : memref<1x16x128xbf16, #tpu.memory_space<vmem>>, vector<1x16x128xbf16>,
    %c2_i32 = arith.constant 2 : i32
    %13 = arith.muli %arg1, %c2_i32 : i32
    %14 = arith.addi %13, %arg2 : i32
    %15 = arith.index_cast %arg0 : i32 to index
    %16 = memref.load %arg3[%15] : memref<2xi32, #tpu.memory_space<smem>>
    %17 = tpu.iota {dimensions = array<i32: 0>} : vector<16x1xi32>
    %c16_i32 = arith.constant 16 : i32
    %18 = arith.muli %14, %c16_i32 : i32
    %19 = vector.broadcast %18 : i32 to vector<16x1xi32>
    %20 = arith.addi %17, %19 : vector<16x1xi32>
    %21 = vector.broadcast %16 : i32 to vector<16x1xi32>
    %22 = arith.cmpi slt, %20, %21 : vector<16x1xi32>
    %23 = vector.extract_strided_slice %8 {offsets = [0, 0], sizes = [16, 16], strides = [1, 1]} : vector<16x128xf32> to vector<16x16xf32>
    %c0_10 = arith.constant 0 : index
    %c0_11 = arith.constant 0 : index
    %c0_12 = arith.constant 0 : index
    %24 = vector.load %arg8[%c0_10, %c0_11, %c0_12] : memref<1x16x16xf32, #tpu.memory_space<vmem>>, vector<1x16x16xf32>
    %25 = vector.shape_cast %24 : vector<1x16x16xf32> to vector<16x16xf32>
    %26 = arith.subf %23, %25 : vector<16x16xf32>
    %27 = math.absf %26 : vector<16x16xf32>
    %c0_13 = arith.constant 0 : index
    %c0_14 = arith.constant 0 : index
    %28 = vector.load %arg7[%c0_13, %c0_14] : memref<1x16xf32, #tpu.memory_space<vmem>>, vector<1x16xf32>
    %29 = vector.broadcast %28 : vector<1x16xf32> to vector<16x16xf32>
    %30 = arith.mulf %27, %29 : vector<16x16xf32>
    %cst_15 = arith.constant 0.000000e+00 : f32
    %31 = vector.shape_cast %22 : vector<16x1xi1> to vector<16x1xi1>
    %32 = vector.broadcast %31 : vector<16x1xi1> to vector<16x16xi1>
    %33 = vector.broadcast %cst_15 : f32 to vector<16x16xf32>
    %34 = arith.select %32, %30, %33 : vector<16x16xi1>, vector<16x16xf32>
    %cst_16 = arith.constant dense<0.000000e+00> : vector<16xf32>
    %35 = vector.multi_reduction <add>, %34, %cst_16 [0] : vector<16x16xf32> to vector<16xf32>
    %36 = vector.shape_cast %35 : vector<16xf32> to vector<1x16xf32>
    %c0_i32 = arith.constant 0 : i32
    %37 = arith.cmpi eq, %arg2, %c0_i32 : i32
    %38 = arith.extui %37 : i1 to i32
    %c0_i32_17 = arith.constant 0 : i32
    %39 = arith.cmpi ne, %38, %c0_i32_17 : i32
    scf.if %39 {
      %cst_26 = arith.constant 0.000000e+00 : f32
      %46 = vector.broadcast %cst_26 : f32 to vector<1x16xf32>
      %c0_27 = arith.constant 0 : index
      %c0_28 = arith.constant 0 : index
      %c0_29 = arith.constant 0 : index
      %c0_30 = arith.constant 0 : index
      %47 = vector.load %arg10[%c0_27, %c0_28, %c0_29, %c0_30] : memref<1x1x1x16xf32, #tpu.memory_space<vmem>>, vector<1x1x1x16xf32>
      %48 = vector.shape_cast %47 : vector<1x1x1x16xf32> to vector<1x16xf32>
      %49 = vector.shape_cast %46 : vector<1x16xf32> to vector<1x1x1x16xf32>
      tpu.vector_store %arg10[%c0_27, %c0_28, %c0_29, %c0_30], %49 {strides = array<i32>} : memref<1x1x1x16xf32, #tpu.memory_space<vmem>>, vector<1x1x1x16xf32>,
    } else {
    }
    %c0_18 = arith.constant 0 : index
    %c0_19 = arith.constant 0 : index
    %c0_20 = arith.constant 0 : index
    %c0_21 = arith.constant 0 : index
    %40 = vector.load %arg10[%c0_18, %c0_19, %c0_20, %c0_21] : memref<1x1x1x16xf32, #tpu.memory_space<vmem>>, vector<1x1x1x16xf32>
    %41 = vector.shape_cast %40 : vector<1x1x1x16xf32> to vector<1x16xf32>
    %42 = arith.addf %41, %36 : vector<1x16xf32>
    %c0_22 = arith.constant 0 : index
    %c0_23 = arith.constant 0 : index
    %c0_24 = arith.constant 0 : index
    %c0_25 = arith.constant 0 : index
    %43 = vector.load %arg10[%c0_22, %c0_23, %c0_24, %c0_25] : memref<1x1x1x16xf32, #tpu.memory_space<vmem>>, vector<1x1x1x16xf32>
    %44 = vector.shape_cast %43 : vector<1x1x1x16xf32> to vector<1x16xf32>
    %45 = vector.shape_cast %42 : vector<1x16xf32> to vector<1x1x1x16xf32>
    tpu.vector_store %arg10[%c0_22, %c0_23, %c0_24, %c0_25], %45 {strides = array<i32>} : memref<1x1x1x16xf32, #tpu.memory_space<vmem>>, vector<1x1x1x16xf32>,
    return
  }
  func.func @transform_0(%arg0: i32, %arg1: i32, %arg2: i32, %arg3: memref<2xi32, #tpu.memory_space<smem>>) -> (i32, i32, i32) {
    %c2_i32 = arith.constant 2 : i32
    %0 = arith.muli %arg1, %c2_i32 : i32
    %1 = arith.addi %0, %arg2 : i32
    %c2_i32_0 = arith.constant 2 : i32
    %2 = arith.minsi %1, %c2_i32_0 : i32
    %c0_i32 = arith.constant 0 : i32
    %c0_i32_1 = arith.constant 0 : i32
    return %arg0, %2, %c0_i32 : i32, i32, i32
  }
  func.func @transform_1(%arg0: i32, %arg1: i32, %arg2: i32, %arg3: memref<2xi32, #tpu.memory_space<smem>>) -> (i32, i32) {
    %c0_i32 = arith.constant 0 : i32
    %c0_i32_0 = arith.constant 0 : i32
    %c0_i32_1 = arith.constant 0 : i32
    return %c0_i32, %c0_i32_0 : i32, i32
  }
  func.func @transform_2(%arg0: i32, %arg1: i32, %arg2: i32, %arg3: memref<2xi32, #tpu.memory_space<smem>>) -> (i32, i32, i32) {
    %c0_i32 = arith.constant 0 : i32
    %c0_i32_0 = arith.constant 0 : i32
    %c0_i32_1 = arith.constant 0 : i32
    return %arg0, %c0_i32, %c0_i32_0 : i32, i32, i32
  }
  func.func @transform_3(%arg0: i32, %arg1: i32, %arg2: i32, %arg3: memref<2xi32, #tpu.memory_space<smem>>) -> (i32, i32) {
    %c0_i32 = arith.constant 0 : i32
    %c0_i32_0 = arith.constant 0 : i32
    %c0_i32_1 = arith.constant 0 : i32
    return %c0_i32, %c0_i32_0 : i32, i32
  }
  func.func @transform_4(%arg0: i32, %arg1: i32, %arg2: i32, %arg3: memref<2xi32, #tpu.memory_space<smem>>) -> (i32, i32, i32) {
    %c2_i32 = arith.constant 2 : i32
    %0 = arith.muli %arg1, %c2_i32 : i32
    %1 = arith.addi %0, %arg2 : i32
    %c2_i32_0 = arith.constant 2 : i32
    %2 = arith.minsi %1, %c2_i32_0 : i32
    %c0_i32 = arith.constant 0 : i32
    %c0_i32_1 = arith.constant 0 : i32
    return %arg0, %2, %c0_i32 : i32, i32, i32
  }
  func.func @transform_5(%arg0: i32, %arg1: i32, %arg2: i32, %arg3: memref<2xi32, #tpu.memory_space<smem>>) -> (i32, i32, i32) {
    %c2_i32 = arith.constant 2 : i32
    %0 = arith.muli %arg1, %c2_i32 : i32
    %1 = arith.addi %0, %arg2 : i32
    %c2_i32_0 = arith.constant 2 : i32
    %2 = arith.minsi %1, %c2_i32_0 : i32
    %c0_i32 = arith.constant 0 : i32
    %c0_i32_1 = arith.constant 0 : i32
    return %arg0, %2, %c0_i32 : i32, i32, i32
  }
  func.func @transform_6(%arg0: i32, %arg1: i32, %arg2: i32, %arg3: memref<2xi32, #tpu.memory_space<smem>>) -> (i32, i32, i32, i32) {
    %c0_i32 = arith.constant 0 : i32
    %c0_i32_0 = arith.constant 0 : i32
    %c0_i32_1 = arith.constant 0 : i32
    return %arg0, %arg1, %c0_i32, %c0_i32_0 : i32, i32, i32, i32
  }
}

</mosaic_0001>

<llo_original>
// kernel: tpu_custom_call.1
$region0: #{tpu_custom_call.1}
  #allocation0 [shape = 'u32[]', space=smem, size = 0x4, offset = 0x4, fixed_abs, tag = 'smem constant byte address 0x4 - core index']
  #allocation1 [shape = 'u32[72,128]{1,0:T(1,128)}', space=vmem, size = 0x9000, scoped, tag = 'internal scratch']
  #allocation2 [shape = 's32[1]{0}', space=sflag, size = 0x4, scoped, tag = 'scoped memory for tpu_custom_call.1']
  #allocation3 [shape = 'u8[512]{0}', space=smem, size = 0x200, scoped, tag = 'prefetched SMEM operand 0']
  %s0 = inlined_call_operand.vmem [shape: s32[2], index: 0, kind: input, shape index: {}]
  %s1 = inlined_call_operand.vmem [shape: f32[2,40,64], index: 1, kind: input, shape index: {}]
  %s2 = inlined_call_operand.vmem [shape: bf16[64,128], index: 2, kind: input, shape index: {}]
  %s3 = inlined_call_operand.vmem [shape: f32[2,1,128], index: 3, kind: input, shape index: {}]
  %s4 = inlined_call_operand.vmem [shape: f32[1,16], index: 4, kind: input, shape index: {}]
  %s5 = inlined_call_operand.vmem [shape: f32[2,44,16], index: 5, kind: input, shape index: {}]
  %s6 = inlined_call_operand.hbm [shape: bf16[2,40,128], index: 6, kind: output, shape index: {0}]
  %s7 = inlined_call_operand.hbm [shape: f32[2,2,1,16], index: 7, kind: output, shape index: {1}]
  %8 = xla_tuple %s6, %s7
  %s9 = sld [smem:[#allocation0]]
  $region65: #{tpu_custom_call.1} parent=0
    _
  %s11 = ssub.s32 1, %s9
  %s12 = scalar_select 0, %s11, %s9
  %s14 = sshll.u32 %s0, 4
  %s15 = int_to_ptr.vmem [resolvable:$true] %s14
  %17 = dma.vmem_to_smem %s15, 16, [#allocation3], [#allocation2]
  %19 = dma.done [#allocation2], 16
  %20 = sfence
  $region1: #{tpu_custom_call.1} parent=0
    #allocation4 [shape = 'u8[8192]{0}', space=vmem, size = 0x2000, scoped, tag = 'output window, operand 0']
    #allocation5 [shape = 's32[2]{0}', space=sflag, size = 0x8, scoped, tag = 'scoped memory for tpu_custom_call.1']
    #allocation6 [shape = 'u8[1024]{0}', space=vmem, size = 0x400, scoped, tag = 'output window, operand 1']
    #allocation7 [shape = 's32[2]{0}', space=sflag, size = 0x8, scoped, tag = 'scoped memory for tpu_custom_call.1']
    %21 = vsyncpa [#allocation5], 0
    %s22 = scalar_lea.sflag [#allocation5], 1
    %23 = vsyncpa %s22, 0
    %24 = vsyncpa [#allocation7], 0
    %s25 = scalar_lea.sflag [#allocation7], 1
    %26 = vsyncpa %s25, 0
    loop: start=0, step=1, limit=10
    $region2: #{tpu_custom_call.1} parent=1 // loop_pre_header
      _
    $region3: #{tpu_custom_call.1} parent=1 // loop_header
      %s28 = sphi 0, %s32
      %p29 = scmp.ge.s32.totalorder %s28, 10
      %s35 = sphi 0, %s54
      %s36 = sphi 0, %s50
      %s37 = sphi 0, %s46
      %s38 = sphi 0, %s35
      %s39 = sphi 0, %s36
      %s40 = sphi 0, %s37
      %s41 = sphi 0, %s38
      %s42 = sphi 0, %s39
      %s43 = sphi 0, %s40
      %s67 = sphi 0, %s69
      %s70 = sphi 0, %s67
      %s71 = sphi 0, %s70
      %s87 = sphi 0, %s71
      %s91 = sphi 0, %s91
      %s93 = sphi 0, %s91
      %s94 = sphi 0, %s93
      %s108 = sphi 0, %s94
      %s114 = sphi 0, %s116
      %s117 = sphi 0, %s114
      %s118 = sphi 0, %s117
      %s134 = sphi 0, %s118
      %s138 = sphi 0, %s138
      %s140 = sphi 0, %s138
      %s141 = sphi 0, %s140
      %s155 = sphi 0, %s141
      %s171 = sphi 0, %s173
      %s174 = sphi 0, %s171
      %s175 = sphi 0, %s174
      %s191 = sphi 0, %s175
      %s207 = sphi 0, %s209
      %s210 = sphi 0, %s207
      %s211 = sphi 0, %s210
      %s227 = sphi 0, %s211
      %s235 = sphi 0, %s237
      %s238 = sphi 0, %s235
      %s239 = sphi 0, %s238
      %s255 = sphi 0, %s239
    $region4: #{tpu_custom_call.1} parent=1 // loop_header_branch
      %31 = sbr.rel (%p29) target = $region8
    $region5: #{tpu_custom_call.1} parent=1 // loop_body
      %s33 = ssub.s32 %s28, 1
      %s34 = ssub.s32 %s28, 2
      %s44 = sadd.s32 1, %s37
      %p45 = scmp.ge.s32.totalorder %s44, 2
      %s46 = scalar_select %p45, 0, %s44
      %s47 = sadd.s32 1, %s36
      %s48 = scalar_select %p45, %s47, %s36
      %p49 = scmp.ge.s32.totalorder %s48, 2
      %s50 = scalar_select %p49, 0, %s48
      %s51 = sadd.s32 1, %s35
      %s52 = scalar_select %p49, %s51, %s35
      %p53 = scmp.ge.s32.totalorder %s52, 2
      %s54 = scalar_select %p53, 0, %s52
      %s55 = smul.u32 %s36, 2
      %s56 = sadd.s32 %s55, %s37
      %p57 = scmp.lt.s32.totalorder %s56, 2
      %s58 = scalar_select %p57, %s56, 2
      %s59 = smul.u32 %s50, 2
      %s60 = sadd.s32 %s59, %s46
      %p61 = scmp.lt.s32.totalorder %s60, 2
      %s62 = scalar_select %p61, %s60, 2
      %s63 = ssub.s32 %s35, %s54
      %s64 = ssub.s32 %s58, %s62
      %s65 = sor.u32 %s63, %s64
      %p66 = scmp.eq.s32.totalorder %s65, 0
      %s68 = sadd.s32 %s67, 1
      %s69 = scalar_select %p66, %s67, %s68
      %p72 = pneg %p66
      %p73 = scmp.eq.s32.totalorder %s28, 7
      %p74 = por %p72, %p73
      %p75 = scmp.ne.s32.totalorder %s67, %s70
      %p76 = scmp.eq.s32.totalorder %s28, 0
      %p77 = por %p75, %p76
      %p78 = scmp.ne.s32.totalorder %s67, %s70
      %p79 = scmp.eq.s32.totalorder %s33, 7
      %p80 = por %p78, %p79
      %p81 = scmp.ne.s32.totalorder %s70, %s71
      %p82 = scmp.eq.s32.totalorder %s33, 0
      %p83 = por %p81, %p82
      %p84 = scmp.ne.s32.totalorder %s70, %s71
      %p85 = scmp.eq.s32.totalorder %s34, 7
      %p86 = por %p84, %p85
      %p88 = scmp.ne.s32.totalorder %s71, %s87
      %p89 = scmp.eq.s32.totalorder %s34, 0
      %p90 = por %p88, %p89
      %s92 = sadd.s32 %s91, 1
      %p95 = scmp.eq.s32.totalorder %s28, 7
      %p96 = scmp.ne.s32.totalorder %s91, %s93
      %p97 = scmp.eq.s32.totalorder %s28, 0
      %p98 = por %p96, %p97
      %p99 = scmp.ne.s32.totalorder %s91, %s93
      %p100 = scmp.eq.s32.totalorder %s33, 7
      %p101 = por %p99, %p100
      %p102 = scmp.ne.s32.totalorder %s93, %s94
      %p103 = scmp.eq.s32.totalorder %s33, 0
      %p104 = por %p102, %p103
      %p105 = scmp.ne.s32.totalorder %s93, %s94
      %p106 = scmp.eq.s32.totalorder %s34, 7
      %p107 = por %p105, %p106
      %p109 = scmp.ne.s32.totalorder %s94, %s108
      %p110 = scmp.eq.s32.totalorder %s34, 0
      %p111 = por %p109, %p110
      %s112 = ssub.s32 %s35, %s54
      %p113 = scmp.eq.s32.totalorder %s112, 0
      %s115 = sadd.s32 %s114, 1
      %s116 = scalar_select %p113, %s114, %s115
      %p119 = pneg %p113
      %p120 = scmp.eq.s32.totalorder %s28, 7
      %p121 = por %p119, %p120
      %p122 = scmp.ne.s32.totalorder %s114, %s117
      %p123 = scmp.eq.s32.totalorder %s28, 0
      %p124 = por %p122, %p123
      %p125 = scmp.ne.s32.totalorder %s114, %s117
      %p126 = scmp.eq.s32.totalorder %s33, 7
      %p127 = por %p125, %p126
      %p128 = scmp.ne.s32.totalorder %s117, %s118
      %p129 = scmp.eq.s32.totalorder %s33, 0
      %p130 = por %p128, %p129
      %p131 = scmp.ne.s32.totalorder %s117, %s118
      %p132 = scmp.eq.s32.totalorder %s34, 7
      %p133 = por %p131, %p132
      %p135 = scmp.ne.s32.totalorder %s118, %s134
      %p136 = scmp.eq.s32.totalorder %s34, 0
      %p137 = por %p135, %p136
      %s139 = sadd.s32 %s138, 1
      %p142 = scmp.eq.s32.totalorder %s28, 7
      %p143 = scmp.ne.s32.totalorder %s138, %s140
      %p144 = scmp.eq.s32.totalorder %s28, 0
      %p145 = por %p143, %p144
      %p146 = scmp.ne.s32.totalorder %s138, %s140
      %p147 = scmp.eq.s32.totalorder %s33, 7
      %p148 = por %p146, %p147
      %p149 = scmp.ne.s32.totalorder %s140, %s141
      %p150 = scmp.eq.s32.totalorder %s33, 0
      %p151 = por %p149, %p150
      %p152 = scmp.ne.s32.totalorder %s140, %s141
      %p153 = scmp.eq.s32.totalorder %s34, 7
      %p154 = por %p152, %p153
      %p156 = scmp.ne.s32.totalorder %s141, %s155
      %p157 = scmp.eq.s32.totalorder %s34, 0
      %p158 = por %p156, %p157
      %s159 = smul.u32 %s36, 2
      %s160 = sadd.s32 %s159, %s37
      %p161 = scmp.lt.s32.totalorder %s160, 2
      %s162 = scalar_select %p161, %s160, 2
      %s163 = smul.u32 %s50, 2
      %s164 = sadd.s32 %s163, %s46
      %p165 = scmp.lt.s32.totalorder %s164, 2
      %s166 = scalar_select %p165, %s164, 2
      %s167 = ssub.s32 %s35, %s54
      %s168 = ssub.s32 %s162, %s166
      %s169 = sor.u32 %s167, %s168
      %p170 = scmp.eq.s32.totalorder %s169, 0
      %s172 = sadd.s32 %s171, 1
      %s173 = scalar_select %p170, %s171, %s172
      %p176 = pneg %p170
      %p177 = scmp.eq.s32.totalorder %s28, 7
      %p178 = por %p176, %p177
      %p179 = scmp.ne.s32.totalorder %s171, %s174
      %p180 = scmp.eq.s32.totalorder %s28, 0
      %p181 = por %p179, %p180
      %p182 = scmp.ne.s32.totalorder %s171, %s174
      %p183 = scmp.eq.s32.totalorder %s33, 7
      %p184 = por %p182, %p183
      %p185 = scmp.ne.s32.totalorder %s174, %s175
      %p186 = scmp.eq.s32.totalorder %s33, 0
      %p187 = por %p185, %p186
      %p188 = scmp.ne.s32.totalorder %s174, %s175
      %p189 = scmp.eq.s32.totalorder %s34, 7
      %p190 = por %p188, %p189
      %p192 = scmp.ne.s32.totalorder %s175, %s191
      %p193 = scmp.eq.s32.totalorder %s34, 0
      %p194 = por %p192, %p193
      %s195 = smul.u32 %s36, 2
      %s196 = sadd.s32 %s195, %s37
      %p197 = scmp.lt.s32.totalorder %s196, 2
      %s198 = scalar_select %p197, %s196, 2
      %s199 = smul.u32 %s50, 2
      %s200 = sadd.s32 %s199, %s46
      %p201 = scmp.lt.s32.totalorder %s200, 2
      %s202 = scalar_select %p201, %s200, 2
      %s203 = ssub.s32 %s35, %s54
      %s204 = ssub.s32 %s198, %s202
      %s205 = sor.u32 %s203, %s204
      %p206 = scmp.eq.s32.totalorder %s205, 0
      %s208 = sadd.s32 %s207, 1
      %s209 = scalar_select %p206, %s207, %s208
      %p212 = pneg %p206
      %p213 = scmp.eq.s32.totalorder %s28, 7
      %p214 = por %p212, %p213
      %p215 = scmp.ne.s32.totalorder %s207, %s210
      %p216 = scmp.eq.s32.totalorder %s28, 0
      %p217 = por %p215, %p216
      %p218 = scmp.ne.s32.totalorder %s207, %s210
      %p219 = scmp.eq.s32.totalorder %s33, 7
      %p220 = por %p218, %p219
      %p221 = scmp.ne.s32.totalorder %s210, %s211
      %p222 = scmp.eq.s32.totalorder %s33, 0
      %p223 = por %p221, %p222
      %p224 = scmp.ne.s32.totalorder %s210, %s211
      %p225 = scmp.eq.s32.totalorder %s34, 7
      %p226 = por %p224, %p225
      %p228 = scmp.ne.s32.totalorder %s211, %s227
      %p229 = scmp.eq.s32.totalorder %s34, 0
      %p230 = por %p228, %p229
      %s231 = ssub.s32 %s35, %s54
      %s232 = ssub.s32 %s36, %s50
      %s233 = sor.u32 %s231, %s232
      %p234 = scmp.eq.s32.totalorder %s233, 0
      %s236 = sadd.s32 %s235, 1
      %s237 = scalar_select %p234, %s235, %s236
      %p240 = pneg %p234
      %p241 = scmp.eq.s32.totalorder %s28, 7
      %p242 = por %p240, %p241
      %p243 = scmp.ne.s32.totalorder %s235, %s238
      %p244 = scmp.eq.s32.totalorder %s28, 0
      %p245 = por %p243, %p244
      %p246 = scmp.ne.s32.totalorder %s235, %s238
      %p247 = scmp.eq.s32.totalorder %s33, 7
      %p248 = por %p246, %p247
      %p249 = scmp.ne.s32.totalorder %s238, %s239
      %p250 = scmp.eq.s32.totalorder %s33, 0
      %p251 = por %p249, %p250
      %p252 = scmp.ne.s32.totalorder %s238, %s239
      %p253 = scmp.eq.s32.totalorder %s34, 7
      %p254 = por %p252, %p253
      %p256 = scmp.ne.s32.totalorder %s239, %s255
      %p257 = scmp.eq.s32.totalorder %s34, 0
      %p258 = por %p256, %p257
      %p259 = scmp.le.s32.totalorder 1, %s28
      %p260 = scmp.lt.s32.totalorder %s28, 9
      %p261 = pnand %p259, %p260
      %p262 = pneg %p261
      // Predicated region
      $region9: #{tpu_custom_call.1} parent=5 // pred_check
        _
      $region10: #{tpu_custom_call.1} parent=5 // pred_check_branch
        %264 = sbr.rel (%p261) target = $region12
      $region11: #{tpu_custom_call.1} parent=5 // pred_region
        %s265 = ssub.s32 %s28, 1
        // Predicated region
        $region13: #{tpu_custom_call.1} parent=11 // pred_check
          %p266 = pneg %p104
        $region14: #{tpu_custom_call.1} parent=11 // pred_check_branch
          %268 = sbr.rel (%p266) target = $region16
        $region15: #{tpu_custom_call.1} parent=11 // pred_region
          _
        $region16: #{tpu_custom_call.1} parent=11 // pred_fallthru
          _
        // Predicated region
        $region17: #{tpu_custom_call.1} parent=11 // pred_check
          %p269 = pneg %p151
        $region18: #{tpu_custom_call.1} parent=11 // pred_check_branch
          %271 = sbr.rel (%p269) target = $region20
        $region19: #{tpu_custom_call.1} parent=11 // pred_region
          _
        $region20: #{tpu_custom_call.1} parent=11 // pred_fallthru
          _
      $region12: #{tpu_custom_call.1} parent=5 // pred_fallthru
        _
      %p272 = scmp.lt.s32.totalorder %s28, 8
      // Predicated region
      $region21: #{tpu_custom_call.1} parent=5 // pred_check
        %p273 = pneg %p272
      $region22: #{tpu_custom_call.1} parent=5 // pred_check_branch
        %275 = sbr.rel (%p273) target = $region24
      $region23: #{tpu_custom_call.1} parent=5 // pred_region
        // Predicated region
        $region25: #{tpu_custom_call.1} parent=23 // pred_check
          %p276 = pneg %p77
        $region26: #{tpu_custom_call.1} parent=23 // pred_check_branch
          %278 = sbr.rel (%p276) target = $region28
        $region27: #{tpu_custom_call.1} parent=23 // pred_region
          %s279 = smul.u32 %s36, 2
          %s280 = sadd.s32 %s279, %s37
          %p281 = scmp.lt.s32.totalorder %s280, 2
          %s282 = scalar_select %p281, %s280, 2
          %s283 = smul.u32 2, %s282
          %s284 = ssub.s32 5, %s283
          %p285 = scmp.lt.s32.totalorder %s284, 2
          %s286 = scalar_select %p285, %s284, 2
          %s287 = smul.u32 8, %s286
          %p288 = scmp.lt.s32.totalorder %s35, 1
          %s289 = scalar_select %p288, %s35, 1
          %p290 = scmp.lt.s32.totalorder %s283, 4
          %s291 = scalar_select %p290, %s283, 4
          %s292 = smul.addr %s289, 5
          %s293 = sadd.s32 %s291, %s292
          %s294 = smul.addr %s293, 8
          %s295 = scalar_lea.vmem %s1, %s294
          %s296 = smul.u32 %s36, 2
          %s297 = sadd.s32 %s296, %s37
          %p298 = scmp.lt.s32.totalorder %s297, 2
          %s299 = scalar_select %p298, %s297, 2
          %s300 = smul.u32 2, %s299
          %s301 = ssub.s32 5, %s300
          %p302 = scmp.lt.s32.totalorder %s301, 2
          %s303 = scalar_select %p302, %s301, 2
          %s304 = smul.u32 8, %s303
        $region28: #{tpu_custom_call.1} parent=23 // pred_fallthru
          _
        // Predicated region
        $region29: #{tpu_custom_call.1} parent=23 // pred_check
          %p305 = pneg %p124
        $region30: #{tpu_custom_call.1} parent=23 // pred_check_branch
          %307 = sbr.rel (%p305) target = $region32
        $region31: #{tpu_custom_call.1} parent=23 // pred_region
          %p308 = scmp.lt.s32.totalorder %s35, 1
          %s309 = scalar_select %p308, %s35, 1
          %s310 = scalar_lea.vmem %s3, %s309
        $region32: #{tpu_custom_call.1} parent=23 // pred_fallthru
          _
        // Predicated region
        $region33: #{tpu_custom_call.1} parent=23 // pred_check
          %p311 = pneg %p181
        $region34: #{tpu_custom_call.1} parent=23 // pred_check_branch
          %313 = sbr.rel (%p311) target = $region36
        $region35: #{tpu_custom_call.1} parent=23 // pred_region
          %s314 = smul.u32 %s36, 2
          %s315 = sadd.s32 %s314, %s37
          %p316 = scmp.lt.s32.totalorder %s315, 2
          %s317 = scalar_select %p316, %s315, 2
          %s318 = smul.u32 2, %s317
          %p319 = scmp.lt.s32.totalorder %s35, 1
          %s320 = scalar_select %p319, %s35, 1
          %p321 = scmp.lt.s32.totalorder %s318, 5
          %s322 = scalar_select %p321, %s318, 5
          %s323 = smul.addr %s320, 6
          %s324 = sadd.s32 %s322, %s323
          %s325 = smul.addr %s324, 8
          %s326 = scalar_lea.vmem %s5, %s325
          %s327 = smul.u32 %s36, 2
          %s328 = sadd.s32 %s327, %s37
          %p329 = scmp.lt.s32.totalorder %s328, 2
          %s330 = scalar_select %p329, %s328, 2
          %s331 = smul.u32 2, %s330
        $region36: #{tpu_custom_call.1} parent=23 // pred_fallthru
          _
      $region24: #{tpu_custom_call.1} parent=5 // pred_fallthru
        _
      %p332 = scmp.le.s32.totalorder 1, %s28
      %p333 = scmp.lt.s32.totalorder %s28, 9
      %p334 = pnand %p332, %p333
      %p335 = pneg %p334
      // Predicated region
      $region37: #{tpu_custom_call.1} parent=5 // pred_check
        _
      $region38: #{tpu_custom_call.1} parent=5 // pred_check_branch
        %337 = sbr.rel (%p334) target = $region40
      $region39: #{tpu_custom_call.1} parent=5 // pred_region
        %s338 = ssub.s32 %s28, 1
        %s339 = smul.u32 %s39, 2
        %s340 = sadd.s32 %s339, %s40
        %p341 = scmp.lt.s32.totalorder %s340, 2
        %s342 = scalar_select %p341, %s340, 2
        %s343 = smul.u32 2, %s342
        %s344 = ssub.s32 5, %s343
        %p345 = scmp.lt.s32.totalorder %s344, 2
        %s346 = scalar_select %p345, %s344, 2
        %s347 = smul.u32 8, %s346
        %p348 = scmp.lt.s32.totalorder %s38, 1
        %s349 = scalar_select %p348, %s38, 1
        %p350 = scmp.lt.s32.totalorder %s343, 4
        %s351 = scalar_select %p350, %s343, 4
        %s352 = smul.addr %s349, 5
        %s353 = sadd.s32 %s351, %s352
        %s354 = smul.addr %s353, 8
        %s355 = scalar_lea.vmem %s1, %s354
        %p356 = pneg %p83
        %p357 = pneg %p80
        %p358 = pneg %p104
        %p359 = pneg %p101
        %p360 = scmp.lt.s32.totalorder %s38, 1
        %s361 = scalar_select %p360, %s38, 1
        %s362 = scalar_lea.vmem %s3, %s361
        %p363 = pneg %p130
        %p364 = pneg %p127
        %p365 = pneg %p151
        %p366 = pneg %p148
        %s367 = smul.u32 %s39, 2
        %s368 = sadd.s32 %s367, %s40
        %p369 = scmp.lt.s32.totalorder %s368, 2
        %s370 = scalar_select %p369, %s368, 2
        %s371 = smul.u32 2, %s370
        %p372 = scmp.lt.s32.totalorder %s38, 1
        %s373 = scalar_select %p372, %s38, 1
        %p374 = scmp.lt.s32.totalorder %s371, 5
        %s375 = scalar_select %p374, %s371, 5
        %s376 = smul.addr %s373, 6
        %s377 = sadd.s32 %s375, %s376
        %s378 = smul.addr %s377, 8
        %s379 = scalar_lea.vmem %s5, %s378
        %p380 = pneg %p187
        %p381 = pneg %p184
        %p382 = pneg %p223
        %p383 = pneg %p220
        %s384 = sand.u32 %s210, 1
        %s385 = scalar_lea.sflag [#allocation5], %s384
        %s386 = sand.u32 %s210, 1
        %s387 = smul.addr %s386, 8
        %s388 = scalar_lea.vmem [#allocation4], %s387
        %p389 = pneg %p251
        %p390 = pneg %p248
        %s391 = sand.u32 %s238, 1
        %s392 = scalar_lea.sflag [#allocation7], %s391
        %s393 = sand.u32 %s238, 1
        %s394 = scalar_lea.vmem [#allocation6], %s393
        %s395 = smul.u32 %s39, 2
        %s396 = sadd.s32 %s395, %s40
        %p397 = scmp.lt.s32.totalorder %s396, 2
        %s398 = scalar_select %p397, %s396, 2
        %s399 = smul.u32 2, %s398
        %s400 = ssub.s32 5, %s399
        %p401 = scmp.lt.s32.totalorder %s400, 2
        %s402 = scalar_select %p401, %s400, 2
        %s403 = smul.u32 8, %s402
        %p404 = scmp.lt.s32.totalorder %s38, 1
        %s405 = scalar_select %p404, %s38, 1
        %p406 = scmp.lt.s32.totalorder %s399, 4
        %s407 = scalar_select %p406, %s399, 4
        %s408 = smul.addr %s405, 5
        %s409 = sadd.s32 %s407, %s408
        %s410 = smul.addr %s409, 8
        %s411 = scalar_lea.vmem %s1, %s410
        %s412 = smul.u32 %s39, 2
        %s413 = sadd.s32 %s412, %s40
        %p414 = scmp.lt.s32.totalorder %s413, 2
        %s415 = scalar_select %p414, %s413, 2
        %s416 = smul.u32 2, %s415
        %s417 = ssub.s32 5, %s416
        %p418 = scmp.lt.s32.totalorder %s417, 2
        %s419 = scalar_select %p418, %s417, 2
        %s420 = smul.u32 8, %s419
        %p421 = scmp.lt.s32.totalorder %s38, 1
        %s422 = scalar_select %p421, %s38, 1
        %s423 = scalar_lea.vmem %s3, %s422
        %s424 = smul.u32 %s39, 2
        %s425 = sadd.s32 %s424, %s40
        %p426 = scmp.lt.s32.totalorder %s425, 2
        %s427 = scalar_select %p426, %s425, 2
        %s428 = smul.u32 2, %s427
        %p429 = scmp.lt.s32.totalorder %s38, 1
        %s430 = scalar_select %p429, %s38, 1
        %p431 = scmp.lt.s32.totalorder %s428, 5
        %s432 = scalar_select %p431, %s428, 5
        %s433 = smul.addr %s430, 6
        %s434 = sadd.s32 %s432, %s433
        %s435 = smul.addr %s434, 8
        %s436 = scalar_lea.vmem %s5, %s435
        %s437 = smul.u32 %s39, 2
        %s438 = sadd.s32 %s437, %s40
        %p439 = scmp.lt.s32.totalorder %s438, 2
        %s440 = scalar_select %p439, %s438, 2
        %s441 = smul.u32 2, %s440
        %s442 = smul.u32 %s39, 2
        %s443 = sadd.s32 %s442, %s40
        %p444 = scmp.lt.s32.totalorder %s443, 2
        %s445 = scalar_select %p444, %s443, 2
        %s446 = smul.u32 2, %s445
        %s447 = ssub.s32 5, %s446
        %p448 = scmp.lt.s32.totalorder %s447, 2
        %s449 = scalar_select %p448, %s447, 2
        %s450 = smul.u32 4, %s449
        %v452 = vld [vmem:[%s411] sm:$0xff]
        %v453 = vld [vmem:[%s411 + $0x8] sm:$0xff]
        %v454 = vpack.c.bf16 %v453, %v452
        %v455 = vld [vmem:[%s2] sm:$0xf]
        %v456 = vld [vmem:[%s2 + $0x4] sm:$0xf]
        %v457 = vld [vmem:[%s2 + $0x8] sm:$0xf]
        %v458 = vld [vmem:[%s2 + $0xc] sm:$0xf]
        %v459 = vld [vmem:[%s2 + $0x10] sm:$0xf]
        %v460 = vld [vmem:[%s2 + $0x14] sm:$0xf]
        %v461 = vld [vmem:[%s2 + $0x18] sm:$0xf]
        %v462 = vld [vmem:[%s2 + $0x1c] sm:$0xf]
        %v463 = vld [vmem:[%s423] sm:$0x1]
        %v465 = vperm.slane %v463, 0
        %v475 = vunpack.c.l.b16 %v455
        %v476 = vunpack.c.l.b16 %v456
        %v477 = vunpack.c.l.b16 %v457
        %v478 = vunpack.c.l.b16 %v458
        %v479 = vunpack.c.l.b16 %v459
        %v480 = vunpack.c.l.b16 %v460
        %v481 = vunpack.c.l.b16 %v461
        %v482 = vunpack.c.l.b16 %v462
        %v483 = vpack.c.b16 %v476, %v475
        %v484 = vpack.c.b16 %v478, %v477
        %v485 = vpack.c.b16 %v480, %v479
        %v486 = vpack.c.b16 %v482, %v481
        %vm491 = vcmask 523264
        %v493 = vsel %vm491, %v454, 0
        %495 = vmatpush.bf16.msra.mxu0 0
        %496 = vmatpush.bf16.msra.mxu0 0
        %497 = vmatpush.bf16.msra.mxu0 0
        %498 = vmatpush.bf16.msra.mxu0 0
        %499 = vmatpush.bf16.msra.mxu0 %v486
        %500 = vmatpush.bf16.msra.mxu0 %v485
        %501 = vmatpush.bf16.msra.mxu0 %v484
        %502 = vmatpush.bf16.msra.mxu0 %v483
        %503 = vmatmul.bf16.gmra.mxu0 %v493
        %v504 = vpop.f32.mrf.mxu0
        %v505 = vadd.f32 %v465, %v504
        %v506 = vpop.f32.mrf.mxu0
        %v507 = vadd.f32 %v465, %v506
        %508 = vdwg.mxu0
        %v509 = vpack.c.bf16 %v505, %v505
        %v510 = vpack.c.bf16 %v507, %v507
        %511 = vst [vmem:[%s388] sm:$0xf] %v509
        %512 = vst [vmem:[%s388 + $0x4] sm:$0xf] %v510
        %s513 = smul.u32 %s39, 2
        %s514 = sadd.s32 %s513, %s40
        %s515 = sld [smem:[#allocation3 + %s38]]
        %v516 = vlaneseq
        %v517 = vshrl.u32 %v516, 7
        %v518 = vadd.s32 %v517, 8
        %s519 = smul.u32 %s514, 16
        %v520 = vstv %s519
        %v521 = vadd.s32 %v517, %v520
        %v522 = vadd.s32 %v518, %v520
        %v523 = vstv %s515
        %vm524 = vcmp.lt.s32.totalorder %v521, %v523
        %vm525 = vcmp.lt.s32.totalorder %v522, %v523
        %v526 = vld [vmem:[%s436] sm:$0xff]
        %v527 = vld [vmem:[%s436 + $0x8] sm:$0xff]
        %v528 = vsub.f32 %v505, %v526
        %v529 = vsub.f32 %v507, %v527
        %v530 = vand.u32 2147483647, %v528
        %v531 = vand.u32 2147483647, %v529
        %v532 = vld [vmem:[%s4] sm:$0x1]
        %v534 = vperm.slane %v532, 0
        %v536 = vmul.f32 %v530, %v534
        %v537 = vmul.f32 %v531, %v534
        %v538 = vsel %vm524, 1, 0
        %v539 = vsel %vm525, 1, 0
        %vm540 = vcmp.eq.s32.totalorder %v538, 1
        %vm541 = vcmp.eq.s32.totalorder %v539, 1
        %v542 = vsel %vm540, %v536, 0.0
        %v543 = vsel %vm541, %v537, 0.0
        %vm544 = vcmask 130048
        %v545 = vsel %vm544, %v542, 0.0
        %v546 = vsel %vm544, %v543, 0.0
        %v547 = vadd.f32 %v545, %v546
        %v548 = vrot.slane %v547, 4
        %v549 = vadd.f32 %v547, %v548
        %v550 = vrot.slane %v549, 2
        %v551 = vadd.f32 %v549, %v550
        %v552 = vrot.slane %v551, 1
        %v553 = vadd.f32 %v551, %v552
        %p554 = scmp.eq.s32.totalorder %s40, 0
        // Predicated region
        $region41: #{tpu_custom_call.1} parent=39 // pred_check
          %p555 = pneg %p554
        $region42: #{tpu_custom_call.1} parent=39 // pred_check_branch
          %557 = sbr.rel (%p555) target = $region44
        $region43: #{tpu_custom_call.1} parent=39 // pred_region
          %vm558 = vcmask 122880
          %559 = vst.msk [vmem:[%s394] sm:$0x1] %vm558, 0.0
        $region44: #{tpu_custom_call.1} parent=39 // pred_fallthru
          _
        %v560 = vld [vmem:[%s394] sm:$0x1]
        %v561 = vadd.f32 %v560, %v553
        %vm562 = vcmask 122880
        %563 = vst.msk [vmem:[%s394] sm:$0x1] %vm562, %v561
        %s564 = sand.u32 %s210, 1
        %s565 = scalar_lea.sflag [#allocation5], %s564
        %s566 = sand.u32 %s210, 1
        %s567 = smul.addr %s566, 8
        %s568 = scalar_lea.vmem [#allocation4], %s567
        %s569 = sand.u32 %s238, 1
        %s570 = scalar_lea.sflag [#allocation7], %s569
        %s571 = sand.u32 %s238, 1
        %s572 = scalar_lea.vmem [#allocation6], %s571
        // Predicated region
        $region45: #{tpu_custom_call.1} parent=39 // pred_check
          %p573 = pneg %p220
        $region46: #{tpu_custom_call.1} parent=39 // pred_check_branch
          %575 = sbr.rel (%p573) target = $region48
        $region47: #{tpu_custom_call.1} parent=39 // pred_region
          %s576 = smul.u32 %s39, 2
          %s577 = sadd.s32 %s576, %s40
          %p578 = scmp.lt.s32.totalorder %s577, 2
          %s579 = scalar_select %p578, %s577, 2
          %s580 = smul.u32 2, %s579
          %s581 = ssub.s32 5, %s580
          %p582 = scmp.lt.s32.totalorder %s581, 2
          %s583 = scalar_select %p582, %s581, 2
          %s584 = smul.u32 4, %s583
          %s585 = ssub.s32 8, %s584
          %s586 = sshll.u32 %s585, 4
          %587 = vsyncadd %s565, %s586
          %p588 = scmp.ne.s32.totalorder 0, %s584
          %s589 = smul.addr %s38, 5
          %s590 = sadd.s32 %s580, %s589
          %s591 = smul.addr %s590, 4
          %s592 = scalar_lea.hbm %s6, %s591
          %s593 = smul.u32 4, %s583
          %s594 = sshll.u32 %s568, 4
          %s595 = int_to_ptr.vmem [resolvable:$true] %s594
          %s596 = sshll.u32 %s592, 4
          %s597 = int_to_ptr.hbm [resolvable:$true] %s596
          %s598 = sshll.u32 %s593, 4
          %602 = dma.vmem_to_hbm [thread:$0]  (%p588), %s595, %s598, %s597, %s565, 64, 64, 4
        $region48: #{tpu_custom_call.1} parent=39 // pred_fallthru
          _
        // Predicated region
        $region49: #{tpu_custom_call.1} parent=39 // pred_check
          %p603 = pneg %p248
        $region50: #{tpu_custom_call.1} parent=39 // pred_check_branch
          %605 = sbr.rel (%p603) target = $region52
        $region51: #{tpu_custom_call.1} parent=39 // pred_region
          %607 = vsyncadd %s570, 0
          %s608 = smul.addr %s38, 2
          %s609 = sadd.s32 %s39, %s608
          %s610 = scalar_lea.hbm %s7, %s609
          %s612 = sshll.u32 %s572, 4
          %s613 = int_to_ptr.vmem [resolvable:$true] %s612
          %s614 = sshll.u32 %s610, 4
          %s615 = int_to_ptr.hbm [resolvable:$true] %s614
          %617 = dma.vmem_to_hbm [thread:$0]  %s613, 16, %s615, %s570
        $region52: #{tpu_custom_call.1} parent=39 // pred_fallthru
          _
      $region40: #{tpu_custom_call.1} parent=5 // pred_fallthru
        _
      %p618 = scmp.le.s32.totalorder 2, %s28
      // Predicated region
      $region53: #{tpu_custom_call.1} parent=5 // pred_check
        %p619 = pneg %p618
      $region54: #{tpu_custom_call.1} parent=5 // pred_check_branch
        %621 = sbr.rel (%p619) target = $region56
      $region55: #{tpu_custom_call.1} parent=5 // pred_region
        %s622 = ssub.s32 %s28, 2
        // Predicated region
        $region57: #{tpu_custom_call.1} parent=55 // pred_check
          %p623 = pneg %p226
        $region58: #{tpu_custom_call.1} parent=55 // pred_check_branch
          %625 = sbr.rel (%p623) target = $region60
        $region59: #{tpu_custom_call.1} parent=55 // pred_region
          %s626 = sand.u32 %s211, 1
          %s627 = scalar_lea.sflag [#allocation5], %s626
          %s628 = sand.u32 %s211, 1
          %s629 = smul.addr %s628, 8
          %s630 = scalar_lea.vmem [#allocation4], %s629
          %632 = dma.done %s627, 128
        $region60: #{tpu_custom_call.1} parent=55 // pred_fallthru
          _
        // Predicated region
        $region61: #{tpu_custom_call.1} parent=55 // pred_check
          %p633 = pneg %p254
        $region62: #{tpu_custom_call.1} parent=55 // pred_check_branch
          %635 = sbr.rel (%p633) target = $region64
        $region63: #{tpu_custom_call.1} parent=55 // pred_region
          %s636 = sand.u32 %s239, 1
          %s637 = scalar_lea.sflag [#allocation7], %s636
          %s638 = sand.u32 %s239, 1
          %s639 = scalar_lea.vmem [#allocation6], %s638
          %641 = dma.done %s637, 16
        $region64: #{tpu_custom_call.1} parent=55 // pred_fallthru
          _
      $region56: #{tpu_custom_call.1} parent=5 // pred_fallthru
        _
    $region6: #{tpu_custom_call.1} parent=1 // loop_footer
      %s32 = sadd.s32 1, %s28
    $region7: #{tpu_custom_call.1} parent=1 // loop_footer_branch
      %27 = sbr.rel target = $region3
    $region8: #{tpu_custom_call.1} parent=1 // loop_exit
      _
    %642 = vsyncpa [#allocation5], 1
    %s643 = scalar_lea.sflag [#allocation5], 1
    %644 = vsyncpa %s643, 1
    %645 = vsyncpa [#allocation7], 1
    %s646 = scalar_lea.sflag [#allocation7], 1
    %647 = vsyncpa %s646, 1

</llo_original>
